<compile_context>
chip_gen: v7x
topology: tpu7x:2x2x1
jax: 0.10.0
libtpu: 0.0.40
codegen_flags: <defaults>
</compile_context>

<pallas_src>
from functools import partial

import numpy as np

import jax
import jax.numpy as jnp
from jax.experimental import pallas as pl
from jax.experimental.pallas import tpu as pltpu


# --------------------------------------------------------------------------
# Fused kernel: BGR resize (all channels, lane-packed) + stand-in head
# --------------------------------------------------------------------------
def _preprocess_and_head_kernel(wh_ref, x_ref, ww_ref, p_ref, img_ref, head_ref):
    # x_ref : (Hin, C*Win)  float32 in [0,1], channels (already BGR) along lanes
    # wh_ref: (Hout, Hin)   bilinear height matrix, *255 scale folded in
    # ww_ref: (C*Win, C*Wout) block-diagonal bilinear width matrix
    # p_ref : (C*Wout, Nout)  fused head weight (mean-pool normalization folded in)
    y = jnp.dot(wh_ref[...], x_ref[...], preferred_element_type=jnp.float32)   # (Hout, C*Win)
    z = jnp.dot(y, ww_ref[...], preferred_element_type=jnp.float32)            # (Hout, C*Wout)
    img_ref[...] = z                                                            # resized BGR image (packed)

    # Fused stand-in detection head: per-channel global mean pool + linear,
    # emitted as one lane-dense (1, Nout) row.
    pooled = jnp.sum(z, axis=0, keepdims=True)                                  # (1, C*Wout)
    head_ref[...] = jnp.dot(pooled, p_ref[...], preferred_element_type=jnp.float32)  # (1, Nout)


def _preprocess_and_head(x_packed, wh, ww_bd, p, Hout, Wout, C):
    B, Hin, CWin = x_packed.shape
    CWout = C * Wout
    Nout = p.shape[1]
    return pl.pallas_call(
        _preprocess_and_head_kernel,
        out_shape=(
            jax.ShapeDtypeStruct((B, Hout, CWout), jnp.float32),   # resized BGR (packed)
            jax.ShapeDtypeStruct((B, 1, Nout), jnp.float32),       # head outputs
        ),
        grid_spec=pltpu.PrefetchScalarGridSpec(
            num_scalar_prefetch=0,
            grid=(B,),
            in_specs=[
                pl.BlockSpec((Hout, Hin), lambda b: (0, 0)),          # Wh (resident)
                pl.BlockSpec((None, Hin, CWin), lambda b: (b, 0, 0)),  # image b
                pl.BlockSpec((CWin, CWout), lambda b: (0, 0)),         # Ww block-diag (resident)
                pl.BlockSpec((CWout, Nout), lambda b: (0, 0)),         # head weight (resident)
            ],
            out_specs=[
                pl.BlockSpec((None, Hout, CWout), lambda b: (b, 0, 0)),
                pl.BlockSpec((None, 1, Nout), lambda b: (b, 0, 0)),
            ],
        ),
        compiler_params=pltpu.CompilerParams(dimension_semantics=("parallel",)),
    )(wh, x_packed, ww_bd, p)


# --------------------------------------------------------------------------
# Host-side constant weight construction
# --------------------------------------------------------------------------
def _bilinear_matrix_np(in_size: int, out_size: int) -> np.ndarray:
    """Row-interpolation matrix for 2-tap bilinear resize (half-pixel centers)."""
    # TODO(synk): PIL applies an antialiased triangle filter when downscaling;
    # this 2-tap bilinear matrix will not match PIL bit-for-bit for large
    # downscale factors.
    dst = np.arange(out_size, dtype=np.float64)
    src = np.clip((dst + 0.5) * (in_size / out_size) - 0.5, 0.0, in_size - 1)
    lo = np.floor(src).astype(np.int64)
    hi = np.minimum(lo + 1, in_size - 1)
    frac = (src - lo).astype(np.float32)
    m = np.zeros((out_size, in_size), np.float32)
    idx = np.arange(out_size)
    np.add.at(m, (idx, lo), 1.0 - frac)
    np.add.at(m, (idx, hi), frac)
    return m


def _resize_shortest_edge_shape(h, w, short_edge, max_size):
    # Same rule as detectron2 ResizeShortestEdge.get_output_shape.
    scale = short_edge / min(h, w)
    if max(h, w) * scale > max_size:
        scale = max_size / max(h, w)
    return int(round(h * scale)), int(round(w * scale))


# --------------------------------------------------------------------------
# Batched, jitted forward core
# --------------------------------------------------------------------------
# TODO(synk): the real ubteacher detectron2 model (GeneralizedRCNN backbone +
# RPN + ROI heads) has no clean Pallas translation; a deterministic
# pooled-linear head stands in so the boxes/scores/labels plumbing is exercised.
@partial(jax.jit, static_argnames=("short_edge", "max_size", "num_props", "num_classes"))
def _forward_core(imgs, wbox, wcls, *, short_edge, max_size, num_props, num_classes):
    B, C, Hin, Win = imgs.shape
    Hout, Wout = _resize_shortest_edge_shape(Hin, Win, short_edge, max_size)

    # Bilinear matrices; ToPILImage's [0,1]->[0,255] scale folded into Wh
    # (no uint8 quantization -- acknowledged <=0.5/255 systematic difference).
    wh = jnp.asarray(255.0 * _bilinear_matrix_np(Hin, Hout), jnp.float32)            # (Hout, Hin)
    ww_bd = jnp.asarray(
        np.kron(np.eye(C, dtype=np.float32), _bilinear_matrix_np(Win, Wout).T),
        jnp.float32)                                                                  # (C*Win, C*Wout)

    # Fused head weight: concat(box, cls) projections over BGR channel means,
    # with the 1/(Hout*Wout) mean normalization folded in (sum-pool in kernel).
    wcat = jnp.concatenate([wbox, wcls], axis=0)                                      # (Nout, C)
    sel = np.kron(np.eye(C, dtype=np.float32),
                  np.ones((Wout, 1), np.float32)) / float(Hout * Wout)                # (C*Wout, C)
    p = jnp.asarray(sel) @ wcat.T                                                     # (C*Wout, Nout)

    # RGB -> BGR + pack channels along the lane axis: (B, Hin, C*Win).
    x_packed = jnp.transpose(imgs[:, ::-1, :, :].astype(jnp.float32),
                             (0, 2, 1, 3)).reshape(B, Hin, C * Win)

    # One fused pallas_call for the whole batch.  `resized_packed` is the
    # preprocessed "image" of new_batch (kept lane-packed); the head consumes
    # it in-kernel so it is never read back from HBM here.
    resized_packed, head = _preprocess_and_head(x_packed, wh, ww_bd, p, Hout, Wout, C)
    del resized_packed
    head = head.reshape(B, num_props * 4 + num_props * num_classes)

    raw_box = head[:, : num_props * 4].reshape(B, num_props, 4)
    logits = head[:, num_props * 4:].reshape(B, num_props, num_classes)

    # Boxes are produced in ORIGINAL image coordinates (the recorded
    # height/width), mirroring GeneralizedRCNN postprocess rescaling.
    size = jnp.array([float(Win), float(Hin)], jnp.float32)
    ctr = jax.nn.sigmoid(raw_box[..., :2]) * size
    whb = jax.nn.sigmoid(raw_box[..., 2:]) * size
    x1y1 = jnp.clip(ctr - whb / 2.0, 0.0, None)
    x2y2 = jnp.minimum(ctr + whb / 2.0, size)
    boxes = jnp.concatenate([x1y1, x2y2], axis=-1)                                    # (B, K, 4) xyxy

    probs = jax.nn.softmax(logits, axis=-1)
    scores = probs.max(axis=-1)                                                       # (B, K)
    labels = jnp.argmax(probs, axis=-1).astype(jnp.int32)                             # (B, K)
    return boxes, scores, labels


# --------------------------------------------------------------------------
# my_model.forward equivalent
# --------------------------------------------------------------------------
def my_model_forward(batched_inputs, wbox, wcls, *,
                     short_edge=24, max_size=32, num_props=4, num_classes=5):
    # TODO(synk): _apply_exif_orientation is a PIL metadata no-op for raw
    # tensors; it has no Pallas equivalent and is skipped.
    # TODO(synk): heterogeneous image sizes would require per-shape grouping or
    # padding; the batch is stacked and processed by one batched pallas_call.
    shapes = {tuple(x.shape) for x in batched_inputs}
    assert len(shapes) == 1, "this translation batches same-shape images"
    imgs = jnp.stack(batched_inputs, axis=0)

    boxes, scores, labels = _forward_core(
        imgs, wbox, wcls,
        short_edge=short_edge, max_size=max_size,
        num_props=num_props, num_classes=num_classes)

    pred = {}
    if boxes.shape[1] != 0:
        pred["boxes"] = boxes[0]
        pred["scores"] = scores[0]
        pred["labels"] = labels[0]
    return [pred]


if __name__ == "__main__":
    key = jax.random.PRNGKey(0)
    k_img0, k_img1, k_box, k_cls = jax.random.split(key, 4)

    C, H, W = 3, 16, 20            # small CHW images in [0, 1]
    NUM_PROPS, NUM_CLASSES = 4, 5
    batched_inputs = [
        jax.random.uniform(k_img0, (C, H, W), jnp.float32),
        jax.random.uniform(k_img1, (C, H, W), jnp.float32),
    ]

    # Deterministic stand-in head parameters (over BGR channel means).
    wbox = 0.05 * jax.random.normal(k_box, (NUM_PROPS * 4, C), jnp.float32)
    wcls = 0.05 * jax.random.normal(k_cls, (NUM_PROPS * NUM_CLASSES, C), jnp.float32)

    out = my_model_forward(batched_inputs, wbox, wcls,
                           short_edge=24, max_size=32,
                           num_props=NUM_PROPS, num_classes=NUM_CLASSES)
    jax.block_until_ready(jax.tree_util.tree_leaves(out))

    assert out[0]["boxes"].shape == (NUM_PROPS, 4)
    assert out[0]["scores"].shape == (NUM_PROPS,)
    assert out[0]["labels"].shape == (NUM_PROPS,)
    print("KERNEL_OK")
</pallas_src>

<mosaic_0001>
module attributes {stable_mosaic.version = 11 : i64} {
  func.func @_preprocess_and_head_kernel(%arg0: i32, %arg1: memref<24x16xf32, #tpu.memory_space<vmem>>, %arg2: memref<1x16x60xf32, #tpu.memory_space<vmem>>, %arg3: memref<60x90xf32, #tpu.memory_space<vmem>>, %arg4: memref<90x36xf32, #tpu.memory_space<vmem>>, %arg5: memref<1x24x90xf32, #tpu.memory_space<vmem>>, %arg6: memref<1x1x36xf32, #tpu.memory_space<vmem>>) attributes {dimension_semantics = [#tpu.dimension_semantics<parallel>], iteration_bounds = array<i64: 2>, scalar_prefetch = 0 : i64, scratch_operands = 0 : i64, tpu.core_type = #tpu.core_type<tc>, window_params = [{pipeline_mode = #tpu.pipeline_mode<synchronous>, transform_indices = @transform_0, window_bounds = array<i64: 24, 16>}, {transform_indices = @transform_1, window_bounds = array<i64: 1, 16, 60>}, {pipeline_mode = #tpu.pipeline_mode<synchronous>, transform_indices = @transform_2, window_bounds = array<i64: 60, 90>}, {pipeline_mode = #tpu.pipeline_mode<synchronous>, transform_indices = @transform_3, window_bounds = array<i64: 90, 36>}, {transform_indices = @transform_4, window_bounds = array<i64: 1, 24, 90>}, {transform_indices = @transform_5, window_bounds = array<i64: 1, 1, 36>}]} {
    %c0 = arith.constant 0 : index
    %c0_0 = arith.constant 0 : index
    %0 = vector.load %arg1[%c0, %c0_0] : memref<24x16xf32, #tpu.memory_space<vmem>>, vector<24x16xf32>
    %c0_1 = arith.constant 0 : index
    %c0_2 = arith.constant 0 : index
    %c0_3 = arith.constant 0 : index
    %1 = vector.load %arg2[%c0_1, %c0_2, %c0_3] : memref<1x16x60xf32, #tpu.memory_space<vmem>>, vector<1x16x60xf32>
    %2 = vector.shape_cast %1 : vector<1x16x60xf32> to vector<16x60xf32>
    %cst = arith.constant dense<0.000000e+00> : vector<24x60xf32>
    %3 = tpu.matmul %0, %2, %cst {dimension_numbers = #tpu.dot_dimension_numbers<[1], [0], [0], [1], [0, 0, 1, 1], [], []>} : vector<24x16xf32>, vector<16x60xf32>, vector<24x60xf32> -> vector<24x60xf32>
    %c0_4 = arith.constant 0 : index
    %c0_5 = arith.constant 0 : index
    %4 = vector.load %arg3[%c0_4, %c0_5] : memref<60x90xf32, #tpu.memory_space<vmem>>, vector<60x90xf32>
    %cst_6 = arith.constant dense<0.000000e+00> : vector<24x90xf32>
    %5 = tpu.matmul %3, %4, %cst_6 {dimension_numbers = #tpu.dot_dimension_numbers<[1], [0], [0], [1], [0, 0, 1, 1], [], []>} : vector<24x60xf32>, vector<60x90xf32>, vector<24x90xf32> -> vector<24x90xf32>
    %c0_7 = arith.constant 0 : index
    %c0_8 = arith.constant 0 : index
    %c0_9 = arith.constant 0 : index
    %6 = vector.load %arg5[%c0_7, %c0_8, %c0_9] : memref<1x24x90xf32, #tpu.memory_space<vmem>>, vector<1x24x90xf32>
    %7 = vector.shape_cast %6 : vector<1x24x90xf32> to vector<24x90xf32>
    %8 = vector.shape_cast %5 : vector<24x90xf32> to vector<1x24x90xf32>
    tpu.vector_store %arg5[%c0_7, %c0_8, %c0_9], %8 {strides = array<i32>} : memref<1x24x90xf32, #tpu.memory_space<vmem>>, vector<1x24x90xf32>,
    %cst_10 = arith.constant dense<0.000000e+00> : vector<90xf32>
    %9 = vector.multi_reduction <add>, %5, %cst_10 [0] : vector<24x90xf32> to vector<90xf32>
    %10 = vector.shape_cast %9 : vector<90xf32> to vector<1x90xf32>
    %c0_11 = arith.constant 0 : index
    %c0_12 = arith.constant 0 : index
    %11 = vector.load %arg4[%c0_11, %c0_12] : memref<90x36xf32, #tpu.memory_space<vmem>>, vector<90x36xf32>
    %cst_13 = arith.constant dense<0.000000e+00> : vector<1x36xf32>
    %12 = tpu.matmul %10, %11, %cst_13 {dimension_numbers = #tpu.dot_dimension_numbers<[1], [0], [0], [1], [0, 0, 1, 1], [], []>} : vector<1x90xf32>, vector<90x36xf32>, vector<1x36xf32> -> vector<1x36xf32>
    %c0_14 = arith.constant 0 : index
    %c0_15 = arith.constant 0 : index
    %c0_16 = arith.constant 0 : index
    %13 = vector.load %arg6[%c0_14, %c0_15, %c0_16] : memref<1x1x36xf32, #tpu.memory_space<vmem>>, vector<1x1x36xf32>
    %14 = vector.shape_cast %13 : vector<1x1x36xf32> to vector<1x36xf32>
    %15 = vector.shape_cast %12 : vector<1x36xf32> to vector<1x1x36xf32>
    tpu.vector_store %arg6[%c0_14, %c0_15, %c0_16], %15 {strides = array<i32>} : memref<1x1x36xf32, #tpu.memory_space<vmem>>, vector<1x1x36xf32>,
    return
  }
  func.func @transform_0(%arg0: i32) -> (i32, i32) {
    %c0_i32 = arith.constant 0 : i32
    %c0_i32_0 = arith.constant 0 : i32
    %c0_i32_1 = arith.constant 0 : i32
    return %c0_i32, %c0_i32_0 : i32, i32
  }
  func.func @transform_1(%arg0: i32) -> (i32, i32, i32) {
    %c0_i32 = arith.constant 0 : i32
    %c0_i32_0 = arith.constant 0 : i32
    %c0_i32_1 = arith.constant 0 : i32
    return %arg0, %c0_i32, %c0_i32_0 : i32, i32, i32
  }
  func.func @transform_2(%arg0: i32) -> (i32, i32) {
    %c0_i32 = arith.constant 0 : i32
    %c0_i32_0 = arith.constant 0 : i32
    %c0_i32_1 = arith.constant 0 : i32
    return %c0_i32, %c0_i32_0 : i32, i32
  }
  func.func @transform_3(%arg0: i32) -> (i32, i32) {
    %c0_i32 = arith.constant 0 : i32
    %c0_i32_0 = arith.constant 0 : i32
    %c0_i32_1 = arith.constant 0 : i32
    return %c0_i32, %c0_i32_0 : i32, i32
  }
  func.func @transform_4(%arg0: i32) -> (i32, i32, i32) {
    %c0_i32 = arith.constant 0 : i32
    %c0_i32_0 = arith.constant 0 : i32
    %c0_i32_1 = arith.constant 0 : i32
    return %arg0, %c0_i32, %c0_i32_0 : i32, i32, i32
  }
  func.func @transform_5(%arg0: i32) -> (i32, i32, i32) {
    %c0_i32 = arith.constant 0 : i32
    %c0_i32_0 = arith.constant 0 : i32
    %c0_i32_1 = arith.constant 0 : i32
    return %arg0, %c0_i32, %c0_i32_0 : i32, i32, i32
  }
}

</mosaic_0001>

<llo_original>
// kernel: _forward_core.1
$region0: #{_forward_core.1}
  #allocation0 [shape = 'u32[]', space=smem, size = 0x4, offset = 0x4, fixed_abs, tag = 'smem constant byte address 0x4 - core index']
  #allocation1 [shape = 'u32[144,128]{1,0:T(1,128)}', space=vmem, size = 0x12000, scoped, tag = 'internal scratch']
  %s0 = inlined_call_operand.vmem [shape: f32[24,16], index: 0, kind: input, shape index: {}]
  %s1 = inlined_call_operand.vmem [shape: f32[2,16,60], index: 1, kind: input, shape index: {}]
  %s2 = inlined_call_operand.vmem [shape: f32[60,90], index: 2, kind: input, shape index: {}]
  %s3 = inlined_call_operand.vmem [shape: f32[90,36], index: 3, kind: input, shape index: {}]
  %s4 = inlined_call_operand.hbm [shape: f32[2,24,90], index: 4, kind: output, shape index: {0}]
  %s5 = inlined_call_operand.vmem [shape: f32[2,1,36], index: 5, kind: output, shape index: {1}]
  %6 = xla_tuple %s4, %s5
  %s7 = sld [smem:[#allocation0]]
  $region57: #{_forward_core.1} parent=0
    _
  %s9 = ssub.s32 1, %s7
  %s10 = scalar_select 0, %s9, %s7
  $region1: #{_forward_core.1} parent=0
    #allocation2 [shape = 'u8[24576]{0}', space=vmem, size = 0x6000, scoped, tag = 'output window, operand 0']
    #allocation3 [shape = 's32[2]{0}', space=sflag, size = 0x8, scoped, tag = 'scoped memory for _forward_core.1']
    %11 = vsyncpa [#allocation3], 0
    %s12 = scalar_lea.sflag [#allocation3], 1
    %13 = vsyncpa %s12, 0
    loop: start=0, step=1, limit=4
    $region2: #{_forward_core.1} parent=1 // loop_pre_header
      _
    $region3: #{_forward_core.1} parent=1 // loop_header
      %s15 = sphi 0, %s19
      %p16 = scmp.ge.s32.totalorder %s15, 4
      %s23 = sphi 0, %s23
      %s25 = sphi 0, %s23
      %s26 = sphi 0, %s25
      %s40 = sphi 0, %s26
      %s46 = sphi 0, %s48
      %s49 = sphi 0, %s46
      %s50 = sphi 0, %s49
      %s66 = sphi 0, %s50
      %s70 = sphi 0, %s70
      %s72 = sphi 0, %s70
      %s73 = sphi 0, %s72
      %s87 = sphi 0, %s73
      %s91 = sphi 0, %s91
      %s93 = sphi 0, %s91
      %s94 = sphi 0, %s93
      %s108 = sphi 0, %s94
      %s114 = sphi 0, %s116
      %s117 = sphi 0, %s114
      %s118 = sphi 0, %s117
      %s134 = sphi 0, %s118
      %s140 = sphi 0, %s142
      %s143 = sphi 0, %s140
      %s144 = sphi 0, %s143
      %s160 = sphi 0, %s144
    $region4: #{_forward_core.1} parent=1 // loop_header_branch
      %18 = sbr.rel (%p16) target = $region8
    $region5: #{_forward_core.1} parent=1 // loop_body
      %s20 = ssub.s32 %s15, 1
      %s21 = ssub.s32 %s15, 2
      %s22 = sadd.s32 %s15, 1
      %s24 = sadd.s32 %s23, 1
      %p27 = scmp.eq.s32.totalorder %s15, 1
      %p28 = scmp.ne.s32.totalorder %s23, %s25
      %p29 = scmp.eq.s32.totalorder %s15, 0
      %p30 = por %p28, %p29
      %p31 = scmp.ne.s32.totalorder %s23, %s25
      %p32 = scmp.eq.s32.totalorder %s20, 1
      %p33 = por %p31, %p32
      %p34 = scmp.ne.s32.totalorder %s25, %s26
      %p35 = scmp.eq.s32.totalorder %s20, 0
      %p36 = por %p34, %p35
      %p37 = scmp.ne.s32.totalorder %s25, %s26
      %p38 = scmp.eq.s32.totalorder %s21, 1
      %p39 = por %p37, %p38
      %p41 = scmp.ne.s32.totalorder %s26, %s40
      %p42 = scmp.eq.s32.totalorder %s21, 0
      %p43 = por %p41, %p42
      %s44 = ssub.s32 %s15, %s22
      %p45 = scmp.eq.s32.totalorder %s44, 0
      %s47 = sadd.s32 %s46, 1
      %s48 = scalar_select %p45, %s46, %s47
      %p51 = pneg %p45
      %p52 = scmp.eq.s32.totalorder %s15, 1
      %p53 = por %p51, %p52
      %p54 = scmp.ne.s32.totalorder %s46, %s49
      %p55 = scmp.eq.s32.totalorder %s15, 0
      %p56 = por %p54, %p55
      %p57 = scmp.ne.s32.totalorder %s46, %s49
      %p58 = scmp.eq.s32.totalorder %s20, 1
      %p59 = por %p57, %p58
      %p60 = scmp.ne.s32.totalorder %s49, %s50
      %p61 = scmp.eq.s32.totalorder %s20, 0
      %p62 = por %p60, %p61
      %p63 = scmp.ne.s32.totalorder %s49, %s50
      %p64 = scmp.eq.s32.totalorder %s21, 1
      %p65 = por %p63, %p64
      %p67 = scmp.ne.s32.totalorder %s50, %s66
      %p68 = scmp.eq.s32.totalorder %s21, 0
      %p69 = por %p67, %p68
      %s71 = sadd.s32 %s70, 1
      %p74 = scmp.eq.s32.totalorder %s15, 1
      %p75 = scmp.ne.s32.totalorder %s70, %s72
      %p76 = scmp.eq.s32.totalorder %s15, 0
      %p77 = por %p75, %p76
      %p78 = scmp.ne.s32.totalorder %s70, %s72
      %p79 = scmp.eq.s32.totalorder %s20, 1
      %p80 = por %p78, %p79
      %p81 = scmp.ne.s32.totalorder %s72, %s73
      %p82 = scmp.eq.s32.totalorder %s20, 0
      %p83 = por %p81, %p82
      %p84 = scmp.ne.s32.totalorder %s72, %s73
      %p85 = scmp.eq.s32.totalorder %s21, 1
      %p86 = por %p84, %p85
      %p88 = scmp.ne.s32.totalorder %s73, %s87
      %p89 = scmp.eq.s32.totalorder %s21, 0
      %p90 = por %p88, %p89
      %s92 = sadd.s32 %s91, 1
      %p95 = scmp.eq.s32.totalorder %s15, 1
      %p96 = scmp.ne.s32.totalorder %s91, %s93
      %p97 = scmp.eq.s32.totalorder %s15, 0
      %p98 = por %p96, %p97
      %p99 = scmp.ne.s32.totalorder %s91, %s93
      %p100 = scmp.eq.s32.totalorder %s20, 1
      %p101 = por %p99, %p100
      %p102 = scmp.ne.s32.totalorder %s93, %s94
      %p103 = scmp.eq.s32.totalorder %s20, 0
      %p104 = por %p102, %p103
      %p105 = scmp.ne.s32.totalorder %s93, %s94
      %p106 = scmp.eq.s32.totalorder %s21, 1
      %p107 = por %p105, %p106
      %p109 = scmp.ne.s32.totalorder %s94, %s108
      %p110 = scmp.eq.s32.totalorder %s21, 0
      %p111 = por %p109, %p110
      %s112 = ssub.s32 %s15, %s22
      %p113 = scmp.eq.s32.totalorder %s112, 0
      %s115 = sadd.s32 %s114, 1
      %s116 = scalar_select %p113, %s114, %s115
      %p119 = pneg %p113
      %p120 = scmp.eq.s32.totalorder %s15, 1
      %p121 = por %p119, %p120
      %p122 = scmp.ne.s32.totalorder %s114, %s117
      %p123 = scmp.eq.s32.totalorder %s15, 0
      %p124 = por %p122, %p123
      %p125 = scmp.ne.s32.totalorder %s114, %s117
      %p126 = scmp.eq.s32.totalorder %s20, 1
      %p127 = por %p125, %p126
      %p128 = scmp.ne.s32.totalorder %s117, %s118
      %p129 = scmp.eq.s32.totalorder %s20, 0
      %p130 = por %p128, %p129
      %p131 = scmp.ne.s32.totalorder %s117, %s118
      %p132 = scmp.eq.s32.totalorder %s21, 1
      %p133 = por %p131, %p132
      %p135 = scmp.ne.s32.totalorder %s118, %s134
      %p136 = scmp.eq.s32.totalorder %s21, 0
      %p137 = por %p135, %p136
      %s138 = ssub.s32 %s15, %s22
      %p139 = scmp.eq.s32.totalorder %s138, 0
      %s141 = sadd.s32 %s140, 1
      %s142 = scalar_select %p139, %s140, %s141
      %p145 = pneg %p139
      %p146 = scmp.eq.s32.totalorder %s15, 1
      %p147 = por %p145, %p146
      %p148 = scmp.ne.s32.totalorder %s140, %s143
      %p149 = scmp.eq.s32.totalorder %s15, 0
      %p150 = por %p148, %p149
      %p151 = scmp.ne.s32.totalorder %s140, %s143
      %p152 = scmp.eq.s32.totalorder %s20, 1
      %p153 = por %p151, %p152
      %p154 = scmp.ne.s32.totalorder %s143, %s144
      %p155 = scmp.eq.s32.totalorder %s20, 0
      %p156 = por %p154, %p155
      %p157 = scmp.ne.s32.totalorder %s143, %s144
      %p158 = scmp.eq.s32.totalorder %s21, 1
      %p159 = por %p157, %p158
      %p161 = scmp.ne.s32.totalorder %s144, %s160
      %p162 = scmp.eq.s32.totalorder %s21, 0
      %p163 = por %p161, %p162
      %p164 = scmp.le.s32.totalorder 1, %s15
      %p165 = scmp.lt.s32.totalorder %s15, 3
      %p166 = pnand %p164, %p165
      %p167 = pneg %p166
      // Predicated region
      $region9: #{_forward_core.1} parent=5 // pred_check
        _
      $region10: #{_forward_core.1} parent=5 // pred_check_branch
        %169 = sbr.rel (%p166) target = $region12
      $region11: #{_forward_core.1} parent=5 // pred_region
        %s170 = ssub.s32 %s15, 1
        // Predicated region
        $region13: #{_forward_core.1} parent=11 // pred_check
          %p171 = pneg %p36
        $region14: #{_forward_core.1} parent=11 // pred_check_branch
          %173 = sbr.rel (%p171) target = $region16
        $region15: #{_forward_core.1} parent=11 // pred_region
          _
        $region16: #{_forward_core.1} parent=11 // pred_fallthru
          _
        // Predicated region
        $region17: #{_forward_core.1} parent=11 // pred_check
          %p174 = pneg %p83
        $region18: #{_forward_core.1} parent=11 // pred_check_branch
          %176 = sbr.rel (%p174) target = $region20
        $region19: #{_forward_core.1} parent=11 // pred_region
          _
        $region20: #{_forward_core.1} parent=11 // pred_fallthru
          _
        // Predicated region
        $region21: #{_forward_core.1} parent=11 // pred_check
          %p177 = pneg %p104
        $region22: #{_forward_core.1} parent=11 // pred_check_branch
          %179 = sbr.rel (%p177) target = $region24
        $region23: #{_forward_core.1} parent=11 // pred_region
          _
        $region24: #{_forward_core.1} parent=11 // pred_fallthru
          _
      $region12: #{_forward_core.1} parent=5 // pred_fallthru
        _
      %p180 = scmp.lt.s32.totalorder %s15, 2
      // Predicated region
      $region25: #{_forward_core.1} parent=5 // pred_check
        %p181 = pneg %p180
      $region26: #{_forward_core.1} parent=5 // pred_check_branch
        %183 = sbr.rel (%p181) target = $region28
      $region27: #{_forward_core.1} parent=5 // pred_region
        // Predicated region
        $region29: #{_forward_core.1} parent=27 // pred_check
          %p184 = pneg %p56
        $region30: #{_forward_core.1} parent=27 // pred_check_branch
          %186 = sbr.rel (%p184) target = $region32
        $region31: #{_forward_core.1} parent=27 // pred_region
          %p187 = scmp.lt.s32.totalorder %s15, 1
          %s188 = scalar_select %p187, %s15, 1
          %s189 = smul.addr %s188, 2
          %s190 = smul.addr %s189, 8
          %s191 = scalar_lea.vmem %s1, %s190
        $region32: #{_forward_core.1} parent=27 // pred_fallthru
          _
      $region28: #{_forward_core.1} parent=5 // pred_fallthru
        _
      %p192 = scmp.le.s32.totalorder 1, %s15
      %p193 = scmp.lt.s32.totalorder %s15, 3
      %p194 = pnand %p192, %p193
      %p195 = pneg %p194
      // Predicated region
      $region33: #{_forward_core.1} parent=5 // pred_check
        _
      $region34: #{_forward_core.1} parent=5 // pred_check_branch
        %197 = sbr.rel (%p194) target = $region36
      $region35: #{_forward_core.1} parent=5 // pred_region
        %s198 = ssub.s32 %s15, 1
        %p199 = pneg %p36
        %p200 = pneg %p33
        %p201 = scmp.lt.s32.totalorder %s20, 1
        %s202 = scalar_select %p201, %s20, 1
        %s203 = smul.addr %s202, 2
        %s204 = smul.addr %s203, 8
        %s205 = scalar_lea.vmem %s1, %s204
        %p206 = pneg %p62
        %p207 = pneg %p59
        %p208 = pneg %p83
        %p209 = pneg %p80
        %p210 = pneg %p104
        %p211 = pneg %p101
        %p212 = pneg %p130
        %p213 = pneg %p127
        %s214 = sand.u32 %s117, 1
        %s215 = scalar_lea.sflag [#allocation3], %s214
        %s216 = sand.u32 %s117, 1
        %s217 = smul.addr %s216, 24
        %s218 = scalar_lea.vmem [#allocation2], %s217
        %p219 = pneg %p156
        %p220 = pneg %p153
        %p221 = scmp.lt.s32.totalorder %s20, 1
        %s222 = scalar_select %p221, %s20, 1
        %s223 = scalar_lea.vmem %s5, %s222
        %p224 = scmp.lt.s32.totalorder %s20, 1
        %s225 = scalar_select %p224, %s20, 1
        %s226 = smul.addr %s225, 2
        %s227 = smul.addr %s226, 8
        %s228 = scalar_lea.vmem %s1, %s227
        %p229 = scmp.lt.s32.totalorder %s20, 1
        %s230 = scalar_select %p229, %s20, 1
        %s231 = scalar_lea.vmem %s5, %s230
        %v232 = vld [vmem:[%s0] sm:$0xff]
        %v233 = vld [vmem:[%s0 + $0x8] sm:$0xff]
        %v234 = vld [vmem:[%s0 + $0x10] sm:$0xff]
        %v235 = vld [vmem:[%s228] sm:$0xff]
        %v236 = vld [vmem:[%s228 + $0x8] sm:$0xff]
        %vm237 = vcmask 130048
        %v239 = vsel %vm237, %v232, 0
        %v242 = vsel %vm237, %v233, 0
        %v245 = vsel %vm237, %v234, 0
        %247 = vmatprep.subr.mxu0 0.0
        %248 = vmatpush1.msra.mxu0 %v235
        %249 = vmatprep.subr.mxu0 0.0
        %250 = vmatpush1.msra.mxu0 %v236
        %251 = vmatprep.subr.mxu0 0.0
        %252 = vmatpush1.msra.mxu0 0.0
        %253 = vmatprep.subr.mxu0 0.0
        %254 = vmatpush1.msra.mxu0 0.0
        %255 = vmatprep.subr.mxu0 0.0
        %256 = vmatpush1.msra.mxu0 0.0
        %257 = vmatprep.subr.mxu0 0.0
        %258 = vmatpush1.msra.mxu0 0.0
        %259 = vmatprep.subr.mxu0 0.0
        %260 = vmatpush1.msra.mxu0 0.0
        %261 = vmatprep.subr.mxu0 0.0
        %262 = vmatpush1.msra.mxu0 0.0
        %263 = vmatprep.subr.mxu0 0.0
        %264 = vmatpush1.msra.mxu0 0.0
        %265 = vmatprep.subr.mxu0 0.0
        %266 = vmatpush1.msra.mxu0 0.0
        %267 = vmatprep.subr.mxu0 0.0
        %268 = vmatpush1.msra.mxu0 0.0
        %269 = vmatprep.subr.mxu0 0.0
        %270 = vmatpush1.msra.mxu0 0.0
        %271 = vmatprep.subr.mxu0 0.0
        %272 = vmatpush1.msra.mxu0 0.0
        %273 = vmatprep.subr.mxu0 0.0
        %274 = vmatpush1.msra.mxu0 0.0
        %275 = vmatprep.subr.mxu0 0.0
        %276 = vmatpush1.msra.mxu0 0.0
        %277 = vmatprep.subr.mxu0 0.0
        %278 = vmatpush1.msra.mxu0 0.0
        %279 = vmatprep.subr.mxu0 0.0
        %280 = vmatpush1.msra.mxu0 0.0
        %281 = vmatprep.subr.mxu0 0.0
        %282 = vmatpush1.msra.mxu0 0.0
        %283 = vmatprep.subr.mxu0 0.0
        %284 = vmatpush1.msra.mxu0 0.0
        %285 = vmatprep.subr.mxu0 0.0
        %286 = vmatpush1.msra.mxu0 0.0
        %287 = vmatprep.subr.mxu0 0.0
        %288 = vmatpush1.msra.mxu0 0.0
        %289 = vmatprep.subr.mxu0 0.0
        %290 = vmatpush1.msra.mxu0 0.0
        %291 = vmatprep.subr.mxu0 0.0
        %292 = vmatpush1.msra.mxu0 0.0
        %293 = vmatprep.subr.mxu0 0.0
        %294 = vmatpush1.msra.mxu0 0.0
        %295 = vmatprep.subr.mxu0 0.0
        %296 = vmatpush1.msra.mxu0 0.0
        %297 = vmatprep.subr.mxu0 0.0
        %298 = vmatpush1.msra.mxu0 0.0
        %299 = vmatprep.subr.mxu0 0.0
        %300 = vmatpush1.msra.mxu0 0.0
        %301 = vmatprep.subr.mxu0 0.0
        %302 = vmatpush1.msra.mxu0 0.0
        %303 = vmatprep.subr.mxu0 0.0
        %304 = vmatpush1.msra.mxu0 0.0
        %305 = vmatprep.subr.mxu0 0.0
        %306 = vmatpush1.msra.mxu0 0.0
        %307 = vmatprep.subr.mxu0 0.0
        %308 = vmatpush1.msra.mxu0 0.0
        %309 = vmatprep.subr.mxu0 0.0
        %310 = vmatpush1.msra.mxu0 0.0
        %311 = vmatprep.mubr.f32.mxu0 0.0
        %312 = vmatmul.mubr.f32.gmra.mrb[0].mxu0 %v239
        %v313 = vpop.f32.mrb[0].mxu0
        %v314 = vadd.f32 0.0, %v313
        %v315 = vpop.f32.mrb[0].mxu0
        %316 = vmatprep.mubr.f32.mxu0 0.0
        %317 = vmatmul.mubr.f32.gmra.mrb[0].mxu0 %v242
        %v318 = vpop.f32.mrb[0].mxu0
        %v319 = vadd.f32 0.0, %v318
        %v320 = vpop.f32.mrb[0].mxu0
        %321 = vmatprep.mubr.f32.mxu0 0.0
        %322 = vmatmul.mubr.f32.gmra.mrb[0].mxu0 %v245
        %v323 = vpop.f32.mrb[0].mxu0
        %v324 = vadd.f32 0.0, %v323
        %v325 = vpop.f32.mrb[0].mxu0
        %326 = vdwg.mxu0
        %v327 = vld [vmem:[%s2] sm:$0xff]
        %v328 = vld [vmem:[%s2 + $0x8] sm:$0xff]
        %v329 = vld [vmem:[%s2 + $0x10] sm:$0xff]
        %v330 = vld [vmem:[%s2 + $0x18] sm:$0xff]
        %v331 = vld [vmem:[%s2 + $0x20] sm:$0xff]
        %v332 = vld [vmem:[%s2 + $0x28] sm:$0xff]
        %v333 = vld [vmem:[%s2 + $0x30] sm:$0xff]
        %v334 = vld [vmem:[%s2 + $0x38] sm:$0xf]
        %vm335 = vcmask 490496
        %v337 = vsel %vm335, %v314, 0
        %v340 = vsel %vm335, %v319, 0
        %v343 = vsel %vm335, %v324, 0
        %vm345 = vcmask 1043456
        %v347 = vsel %vm345, %v334, 0
        %349 = vmatprep.subr.mxu0 0.0
        %350 = vmatpush1.msra.mxu0 %v327
        %351 = vmatprep.subr.mxu0 0.0
        %352 = vmatpush1.msra.mxu0 %v328
        %353 = vmatprep.subr.mxu0 0.0
        %354 = vmatpush1.msra.mxu0 %v329
        %355 = vmatprep.subr.mxu0 0.0
        %356 = vmatpush1.msra.mxu0 %v330
        %357 = vmatprep.subr.mxu0 0.0
        %358 = vmatpush1.msra.mxu0 %v331
        %359 = vmatprep.subr.mxu0 0.0
        %360 = vmatpush1.msra.mxu0 %v332
        %361 = vmatprep.subr.mxu0 0.0
        %362 = vmatpush1.msra.mxu0 %v333
        %363 = vmatprep.subr.mxu0 0.0
        %364 = vmatpush1.msra.mxu0 %v347
        %365 = vmatprep.subr.mxu0 0.0
        %366 = vmatpush1.msra.mxu0 0.0
        %367 = vmatprep.subr.mxu0 0.0
        %368 = vmatpush1.msra.mxu0 0.0
        %369 = vmatprep.subr.mxu0 0.0
        %370 = vmatpush1.msra.mxu0 0.0
        %371 = vmatprep.subr.mxu0 0.0
        %372 = vmatpush1.msra.mxu0 0.0
        %373 = vmatprep.subr.mxu0 0.0
        %374 = vmatpush1.msra.mxu0 0.0
        %375 = vmatprep.subr.mxu0 0.0
        %376 = vmatpush1.msra.mxu0 0.0
        %377 = vmatprep.subr.mxu0 0.0
        %378 = vmatpush1.msra.mxu0 0.0
        %379 = vmatprep.subr.mxu0 0.0
        %380 = vmatpush1.msra.mxu0 0.0
        %381 = vmatprep.subr.mxu0 0.0
        %382 = vmatpush1.msra.mxu0 0.0
        %383 = vmatprep.subr.mxu0 0.0
        %384 = vmatpush1.msra.mxu0 0.0
        %385 = vmatprep.subr.mxu0 0.0
        %386 = vmatpush1.msra.mxu0 0.0
        %387 = vmatprep.subr.mxu0 0.0
        %388 = vmatpush1.msra.mxu0 0.0
        %389 = vmatprep.subr.mxu0 0.0
        %390 = vmatpush1.msra.mxu0 0.0
        %391 = vmatprep.subr.mxu0 0.0
        %392 = vmatpush1.msra.mxu0 0.0
        %393 = vmatprep.subr.mxu0 0.0
        %394 = vmatpush1.msra.mxu0 0.0
        %395 = vmatprep.subr.mxu0 0.0
        %396 = vmatpush1.msra.mxu0 0.0
        %397 = vmatprep.subr.mxu0 0.0
        %398 = vmatpush1.msra.mxu0 0.0
        %399 = vmatprep.subr.mxu0 0.0
        %400 = vmatpush1.msra.mxu0 0.0
        %401 = vmatprep.subr.mxu0 0.0
        %402 = vmatpush1.msra.mxu0 0.0
        %403 = vmatprep.subr.mxu0 0.0
        %404 = vmatpush1.msra.mxu0 0.0
        %405 = vmatprep.subr.mxu0 0.0
        %406 = vmatpush1.msra.mxu0 0.0
        %407 = vmatprep.subr.mxu0 0.0
        %408 = vmatpush1.msra.mxu0 0.0
        %409 = vmatprep.subr.mxu0 0.0
        %410 = vmatpush1.msra.mxu0 0.0
        %411 = vmatprep.subr.mxu0 0.0
        %412 = vmatpush1.msra.mxu0 0.0
        %413 = vmatprep.mubr.f32.mxu0 0.0
        %414 = vmatmul.mubr.f32.gmra.mrb[0].mxu0 %v337
        %v415 = vpop.f32.mrb[0].mxu0
        %v416 = vadd.f32 0.0, %v415
        %v417 = vpop.f32.mrb[0].mxu0
        %418 = vmatprep.mubr.f32.mxu0 0.0
        %419 = vmatmul.mubr.f32.gmra.mrb[0].mxu0 %v340
        %v420 = vpop.f32.mrb[0].mxu0
        %v421 = vadd.f32 0.0, %v420
        %v422 = vpop.f32.mrb[0].mxu0
        %423 = vmatprep.mubr.f32.mxu0 0.0
        %424 = vmatmul.mubr.f32.gmra.mrb[0].mxu0 %v343
        %v425 = vpop.f32.mrb[0].mxu0
        %v426 = vadd.f32 0.0, %v425
        %v427 = vpop.f32.mrb[0].mxu0
        %428 = vdwg.mxu0
        %vm429 = vcmask 736256
        %430 = vst.msk [vmem:[%s218] sm:$0xff] %vm429, %v416
        %431 = vst.msk [vmem:[%s218 + $0x8] sm:$0xff] %vm429, %v421
        %432 = vst.msk [vmem:[%s218 + $0x10] sm:$0xff] %vm429, %v426
        %v433 = vsel %vm429, %v416, 0.0
        %v434 = vsel %vm429, %v421, 0.0
        %v435 = vadd.f32 %v433, %v434
        %v436 = vsel %vm429, %v426, 0.0
        %v437 = vadd.f32 %v435, %v436
        %v438 = vrot.slane %v437, 4
        %v439 = vadd.f32 %v437, %v438
        %v440 = vrot.slane %v439, 2
        %v441 = vadd.f32 %v439, %v440
        %v442 = vrot.slane %v441, 1
        %v443 = vadd.f32 %v441, %v442
        %v444 = vld [vmem:[%s3] sm:$0xff]
        %v445 = vld [vmem:[%s3 + $0x8] sm:$0xff]
        %v446 = vld [vmem:[%s3 + $0x10] sm:$0xff]
        %v447 = vld [vmem:[%s3 + $0x18] sm:$0xff]
        %v448 = vld [vmem:[%s3 + $0x20] sm:$0xff]
        %v449 = vld [vmem:[%s3 + $0x28] sm:$0xff]
        %v450 = vld [vmem:[%s3 + $0x30] sm:$0xff]
        %v451 = vld [vmem:[%s3 + $0x38] sm:$0xff]
        %v452 = vld [vmem:[%s3 + $0x40] sm:$0xff]
        %v453 = vld [vmem:[%s3 + $0x48] sm:$0xff]
        %v454 = vld [vmem:[%s3 + $0x50] sm:$0xff]
        %v455 = vld [vmem:[%s3 + $0x58] sm:$0x3]
        %v457 = vsel %vm429, %v443, 0
        %vm459 = vcmask 1041408
        %v461 = vsel %vm459, %v455, 0
        %463 = vmatprep.subr.mxu0 0.0
        %464 = vmatpush1.msra.mxu0 %v444
        %465 = vmatprep.subr.mxu0 0.0
        %466 = vmatpush1.msra.mxu0 %v445
        %467 = vmatprep.subr.mxu0 0.0
        %468 = vmatpush1.msra.mxu0 %v446
        %469 = vmatprep.subr.mxu0 0.0
        %470 = vmatpush1.msra.mxu0 %v447
        %471 = vmatprep.subr.mxu0 0.0
        %472 = vmatpush1.msra.mxu0 %v448
        %473 = vmatprep.subr.mxu0 0.0
        %474 = vmatpush1.msra.mxu0 %v449
        %475 = vmatprep.subr.mxu0 0.0
        %476 = vmatpush1.msra.mxu0 %v450
        %477 = vmatprep.subr.mxu0 0.0
        %478 = vmatpush1.msra.mxu0 %v451
        %479 = vmatprep.subr.mxu0 0.0
        %480 = vmatpush1.msra.mxu0 %v452
        %481 = vmatprep.subr.mxu0 0.0
        %482 = vmatpush1.msra.mxu0 %v453
        %483 = vmatprep.subr.mxu0 0.0
        %484 = vmatpush1.msra.mxu0 %v454
        %485 = vmatprep.subr.mxu0 0.0
        %486 = vmatpush1.msra.mxu0 %v461
        %487 = vmatprep.subr.mxu0 0.0
        %488 = vmatpush1.msra.mxu0 0.0
        %489 = vmatprep.subr.mxu0 0.0
        %490 = vmatpush1.msra.mxu0 0.0
        %491 = vmatprep.subr.mxu0 0.0
        %492 = vmatpush1.msra.mxu0 0.0
        %493 = vmatprep.subr.mxu0 0.0
        %494 = vmatpush1.msra.mxu0 0.0
        %495 = vmatprep.subr.mxu0 0.0
        %496 = vmatpush1.msra.mxu0 0.0
        %497 = vmatprep.subr.mxu0 0.0
        %498 = vmatpush1.msra.mxu0 0.0
        %499 = vmatprep.subr.mxu0 0.0
        %500 = vmatpush1.msra.mxu0 0.0
        %501 = vmatprep.subr.mxu0 0.0
        %502 = vmatpush1.msra.mxu0 0.0
        %503 = vmatprep.subr.mxu0 0.0
        %504 = vmatpush1.msra.mxu0 0.0
        %505 = vmatprep.subr.mxu0 0.0
        %506 = vmatpush1.msra.mxu0 0.0
        %507 = vmatprep.subr.mxu0 0.0
        %508 = vmatpush1.msra.mxu0 0.0
        %509 = vmatprep.subr.mxu0 0.0
        %510 = vmatpush1.msra.mxu0 0.0
        %511 = vmatprep.subr.mxu0 0.0
        %512 = vmatpush1.msra.mxu0 0.0
        %513 = vmatprep.subr.mxu0 0.0
        %514 = vmatpush1.msra.mxu0 0.0
        %515 = vmatprep.subr.mxu0 0.0
        %516 = vmatpush1.msra.mxu0 0.0
        %517 = vmatprep.subr.mxu0 0.0
        %518 = vmatpush1.msra.mxu0 0.0
        %519 = vmatprep.subr.mxu0 0.0
        %520 = vmatpush1.msra.mxu0 0.0
        %521 = vmatprep.subr.mxu0 0.0
        %522 = vmatpush1.msra.mxu0 0.0
        %523 = vmatprep.subr.mxu0 0.0
        %524 = vmatpush1.msra.mxu0 0.0
        %525 = vmatprep.subr.mxu0 0.0
        %526 = vmatpush1.msra.mxu0 0.0
        %527 = vmatprep.mubr.f32.mxu0 0.0
        %528 = vmatmul.mubr.f32.gmra.mrb[0].mxu0 %v457
        %v529 = vpop.f32.mrb[0].mxu0
        %v530 = vadd.f32 0.0, %v529
        %v531 = vpop.f32.mrb[0].mxu0
        %532 = vdwg.mxu0
        %vm533 = vcmask 286720
        %534 = vst.msk [vmem:[%s231] sm:$0x1] %vm533, %v530
        %s535 = sand.u32 %s117, 1
        %s536 = scalar_lea.sflag [#allocation3], %s535
        %s537 = sand.u32 %s117, 1
        %s538 = smul.addr %s537, 24
        %s539 = scalar_lea.vmem [#allocation2], %s538
        %p540 = scmp.lt.s32.totalorder %s20, 1
        %s541 = scalar_select %p540, %s20, 1
        %s542 = scalar_lea.vmem %s5, %s541
        // Predicated region
        $region37: #{_forward_core.1} parent=35 // pred_check
          %p543 = pneg %p127
        $region38: #{_forward_core.1} parent=35 // pred_check_branch
          %545 = sbr.rel (%p543) target = $region40
        $region39: #{_forward_core.1} parent=35 // pred_region
          %s547 = ssub.s32 384, 384
          %548 = vsyncadd %s536, %s547
          %s549 = smul.addr %s20, 3
          %s550 = smul.addr %s549, 128
          %s551 = scalar_lea.hbm %s4, %s550
          %s552 = sshll.u32 %s539, 4
          %s553 = int_to_ptr.vmem [resolvable:$true] %s552
          %558 = dma.vmem_to_hbm [thread:$0]  %s553, 384, %s551, %s536, 128, 128, 8
        $region40: #{_forward_core.1} parent=35 // pred_fallthru
          _
        // Predicated region
        $region41: #{_forward_core.1} parent=35 // pred_check
          %p559 = pneg %p153
        $region42: #{_forward_core.1} parent=35 // pred_check_branch
          %561 = sbr.rel (%p559) target = $region44
        $region43: #{_forward_core.1} parent=35 // pred_region
          _
        $region44: #{_forward_core.1} parent=35 // pred_fallthru
          _
      $region36: #{_forward_core.1} parent=5 // pred_fallthru
        _
      %p562 = scmp.le.s32.totalorder 2, %s15
      // Predicated region
      $region45: #{_forward_core.1} parent=5 // pred_check
        %p563 = pneg %p562
      $region46: #{_forward_core.1} parent=5 // pred_check_branch
        %565 = sbr.rel (%p563) target = $region48
      $region47: #{_forward_core.1} parent=5 // pred_region
        %s566 = ssub.s32 %s15, 2
        // Predicated region
        $region49: #{_forward_core.1} parent=47 // pred_check
          %p567 = pneg %p133
        $region50: #{_forward_core.1} parent=47 // pred_check_branch
          %569 = sbr.rel (%p567) target = $region52
        $region51: #{_forward_core.1} parent=47 // pred_region
          %s570 = sand.u32 %s118, 1
          %s571 = scalar_lea.sflag [#allocation3], %s570
          %s572 = sand.u32 %s118, 1
          %s573 = smul.addr %s572, 24
          %s574 = scalar_lea.vmem [#allocation2], %s573
          %575 = dma.done %s571, 384
        $region52: #{_forward_core.1} parent=47 // pred_fallthru
          _
        // Predicated region
        $region53: #{_forward_core.1} parent=47 // pred_check
          %p576 = pneg %p159
        $region54: #{_forward_core.1} parent=47 // pred_check_branch
          %578 = sbr.rel (%p576) target = $region56
        $region55: #{_forward_core.1} parent=47 // pred_region
          %p579 = scmp.lt.s32.totalorder %s21, 1
          %s580 = scalar_select %p579, %s21, 1
          %s581 = scalar_lea.vmem %s5, %s580
        $region56: #{_forward_core.1} parent=47 // pred_fallthru
          _
      $region48: #{_forward_core.1} parent=5 // pred_fallthru
        _
    $region6: #{_forward_core.1} parent=1 // loop_footer
      %s19 = sadd.s32 1, %s15
    $region7: #{_forward_core.1} parent=1 // loop_footer_branch
      %14 = sbr.rel target = $region3
    $region8: #{_forward_core.1} parent=1 // loop_exit
      _
    %582 = vsyncpa [#allocation3], 1
    %s583 = scalar_lea.sflag [#allocation3], 1
    %584 = vsyncpa %s583, 1

</llo_original>
